<compile_context>
chip_gen: v7x
topology: tpu7x:2x2x1
jax: 0.10.0
libtpu: 0.0.40
codegen_flags: <defaults>
</compile_context>

<pallas_src>
import numpy as np
import jax
import jax.numpy as jnp
from jax.experimental import pallas as pl
from jax.experimental.pallas import tpu as pltpu


def _integral_kernel(x_ref, w_ref, o_ref):
    # x_ref: (tn, 4*R)  regression logits in the module's native layout
    # w_ref: (4*R, 8)   static block-diagonal weights (see _make_weights)
    # o_ref: (tn, 4)    expected bin per group (distance offsets)
    x = x_ref[...].astype(jnp.float32)     # f32 math (v5e has no bf16 VPU/EUP)
    tn, C = x.shape
    R = C // 4

    # Numerically stable per-group softmax prep: subtract each group's own max
    # (whole-row max would be wrong — it can zero another group's denominator).
    parts = []
    for g in range(4):                              # static unroll, 4 groups
        xg = x[:, g * R:(g + 1) * R]                # (tn, R) static lane slice
        mg = jnp.max(xg, axis=1, keepdims=True)     # (tn, 1)
        parts.append(jnp.broadcast_to(mg, (tn, R)))
    m_full = jnp.concatenate(parts, axis=1)         # (tn, C) per-group max
    e = jnp.exp(x - m_full)                         # single full-width EUP pass

    # One MXU matmul yields all 4 projected numerators (cols 0..3) and all 4
    # softmax denominators (cols 4..7) at once.
    y = jnp.dot(e, w_ref[...],
                preferred_element_type=jnp.float32,
                precision=jax.lax.Precision.HIGHEST)        # (tn, 8)

    # Exact divide (not approx reciprocal) to stay within 1e-4 of the reference.
    o_ref[...] = (y[:, 0:4] / y[:, 4:8]).astype(o_ref.dtype)


def _make_weights(reg_max):
    """(4*(reg_max+1), 8) block-diagonal weight.

    Column g   (g = 0..3): bin indices 0..reg_max on group g's rows (projection).
    Column 4+g (g = 0..3): 1.0 on group g's rows (softmax denominator).
    """
    R = reg_max + 1
    w = np.zeros((4 * R, 8), dtype=np.float32)
    proj = np.arange(R, dtype=np.float32)
    for g in range(4):
        w[g * R:(g + 1) * R, g] = proj
        w[g * R:(g + 1) * R, 4 + g] = 1.0
    return jnp.asarray(w)


def _choose_tile_n(n_rows, max_tile_n):
    """Row-tile size: a multiple of 8 (or the full extent), preferring >= 2
    roughly balanced tiles so the parallel grid axis can use both TensorCores
    on v7x, capped so double-buffered blocks + intermediates stay in VMEM."""
    assert max_tile_n % 8 == 0, "max_tile_n must be a multiple of 8"
    if n_rows <= 8:
        return n_rows                       # tiny: single full-extent block
    half = -(-n_rows // 2)                  # ceil(n_rows / 2)
    tn = ((half + 7) // 8) * 8              # round up to a sublane multiple
    return min(tn, max_tile_n)


def integral_pallas(x, reg_max=16, max_tile_n=4096):
    """x: (N, 4*(reg_max+1)) -> (N, 4), matching the PyTorch Integral module."""
    N = x.shape[0]
    R = reg_max + 1
    C = 4 * R
    assert x.shape[1] == C, f"expected last dim {C}, got {x.shape[1]}"

    w = _make_weights(reg_max)
    tn = _choose_tile_n(N, max_tile_n)
    n_tiles = pl.cdiv(N, tn)

    return pl.pallas_call(
        _integral_kernel,
        out_shape=jax.ShapeDtypeStruct((N, 4), x.dtype),
        grid_spec=pltpu.PrefetchScalarGridSpec(
            num_scalar_prefetch=0,
            grid=(n_tiles,),
            in_specs=[
                pl.BlockSpec((tn, C), lambda i: (i, 0)),  # contiguous row tile
                pl.BlockSpec((C, 8), lambda i: (0, 0)),   # resident tiny weight
            ],
            out_specs=pl.BlockSpec((tn, 4), lambda i: (i, 0)),
        ),
        compiler_params=pltpu.CompilerParams(
            dimension_semantics=("parallel",),      # megacore split on v7x
            vmem_limit_bytes=32 * 1024 * 1024,      # safe on v5e/v6e/v7x
        ),
    )(x, w)


def integral_ref(x, reg_max=16):
    """Pure-JAX reference mirroring the PyTorch module."""
    R = reg_max + 1
    p = jax.nn.softmax(x.reshape(-1, R).astype(jnp.float32), axis=1)
    proj = jnp.linspace(0.0, float(reg_max), R, dtype=jnp.float32)
    return (p @ proj).reshape(-1, 4).astype(x.dtype)


if __name__ == "__main__":
    reg_max = 16
    key = jax.random.PRNGKey(0)

    # Small shape consistent with the module: 8 anchor locations.
    N = 8
    x = jax.random.normal(key, (N, 4 * (reg_max + 1)), dtype=jnp.float32)
    out = jax.block_until_ready(integral_pallas(x, reg_max=reg_max))
    ref = integral_ref(x, reg_max=reg_max)
    assert out.shape == (N, 4), out.shape
    assert jnp.allclose(out, ref, atol=1e-4, rtol=1e-4), (
        f"max abs err = {jnp.max(jnp.abs(out - ref))}"
    )

    # Multi-tile + partial edge-block path (N=600 -> tn=304, 2 tiles, ragged),
    # with group-0 logits shifted by +200 to verify per-group max stability.
    N2 = 600
    x2 = jax.random.normal(jax.random.PRNGKey(1), (N2, 4 * (reg_max + 1)),
                           dtype=jnp.float32)
    x2 = x2.at[:, : reg_max + 1].add(200.0)
    out2 = jax.block_until_ready(integral_pallas(x2, reg_max=reg_max))
    ref2 = integral_ref(x2, reg_max=reg_max)
    assert out2.shape == (N2, 4), out2.shape
    assert jnp.all(jnp.isfinite(out2))
    assert jnp.allclose(out2, ref2, atol=1e-4, rtol=1e-4), (
        f"max abs err = {jnp.max(jnp.abs(out2 - ref2))}"
    )

    # Tiny, non-multiple-of-8 row count (full-extent block path).
    N3 = 3
    x3 = jax.random.normal(jax.random.PRNGKey(2), (N3, 4 * (reg_max + 1)),
                           dtype=jnp.float32)
    out3 = jax.block_until_ready(integral_pallas(x3, reg_max=reg_max))
    ref3 = integral_ref(x3, reg_max=reg_max)
    assert jnp.allclose(out3, ref3, atol=1e-4, rtol=1e-4), (
        f"max abs err = {jnp.max(jnp.abs(out3 - ref3))}"
    )

    print("KERNEL_OK")
</pallas_src>

<mosaic_0001>
module attributes {stable_mosaic.version = 11 : i64} {
  func.func @_integral_kernel(%arg0: i32, %arg1: memref<8x68xf32, #tpu.memory_space<vmem>>, %arg2: memref<68x8xf32, #tpu.memory_space<vmem>>, %arg3: memref<8x4xf32, #tpu.memory_space<vmem>>) attributes {dimension_semantics = [#tpu.dimension_semantics<parallel>], iteration_bounds = array<i64: 1>, scalar_prefetch = 0 : i64, scratch_operands = 0 : i64, tpu.core_type = #tpu.core_type<tc>, window_params = [{transform_indices = @transform_0, window_bounds = array<i64: 8, 68>}, {pipeline_mode = #tpu.pipeline_mode<synchronous>, transform_indices = @transform_1, window_bounds = array<i64: 68, 8>}, {transform_indices = @transform_2, window_bounds = array<i64: 8, 4>}]} {
    %c0 = arith.constant 0 : index
    %c0_0 = arith.constant 0 : index
    %0 = vector.load %arg1[%c0, %c0_0] : memref<8x68xf32, #tpu.memory_space<vmem>>, vector<8x68xf32>
    %1 = vector.extract_strided_slice %0 {offsets = [0, 0], sizes = [8, 17], strides = [1, 1]} : vector<8x68xf32> to vector<8x17xf32>
    %cst = arith.constant dense<0xFF800000> : vector<8xf32>
    %2 = vector.multi_reduction <maximumf>, %1, %cst [1] : vector<8x17xf32> to vector<8xf32>
    %3 = vector.shape_cast %2 : vector<8xf32> to vector<8x1xf32>
    %4 = vector.shape_cast %3 : vector<8x1xf32> to vector<8x1xf32>
    %5 = vector.broadcast %4 : vector<8x1xf32> to vector<8x17xf32>
    %6 = vector.extract_strided_slice %0 {offsets = [0, 17], sizes = [8, 17], strides = [1, 1]} : vector<8x68xf32> to vector<8x17xf32>
    %cst_1 = arith.constant dense<0xFF800000> : vector<8xf32>
    %7 = vector.multi_reduction <maximumf>, %6, %cst_1 [1] : vector<8x17xf32> to vector<8xf32>
    %8 = vector.shape_cast %7 : vector<8xf32> to vector<8x1xf32>
    %9 = vector.shape_cast %8 : vector<8x1xf32> to vector<8x1xf32>
    %10 = vector.broadcast %9 : vector<8x1xf32> to vector<8x17xf32>
    %11 = vector.extract_strided_slice %0 {offsets = [0, 34], sizes = [8, 17], strides = [1, 1]} : vector<8x68xf32> to vector<8x17xf32>
    %cst_2 = arith.constant dense<0xFF800000> : vector<8xf32>
    %12 = vector.multi_reduction <maximumf>, %11, %cst_2 [1] : vector<8x17xf32> to vector<8xf32>
    %13 = vector.shape_cast %12 : vector<8xf32> to vector<8x1xf32>
    %14 = vector.shape_cast %13 : vector<8x1xf32> to vector<8x1xf32>
    %15 = vector.broadcast %14 : vector<8x1xf32> to vector<8x17xf32>
    %16 = vector.extract_strided_slice %0 {offsets = [0, 51], sizes = [8, 17], strides = [1, 1]} : vector<8x68xf32> to vector<8x17xf32>
    %cst_3 = arith.constant dense<0xFF800000> : vector<8xf32>
    %17 = vector.multi_reduction <maximumf>, %16, %cst_3 [1] : vector<8x17xf32> to vector<8xf32>
    %18 = vector.shape_cast %17 : vector<8xf32> to vector<8x1xf32>
    %19 = vector.shape_cast %18 : vector<8x1xf32> to vector<8x1xf32>
    %20 = vector.broadcast %19 : vector<8x1xf32> to vector<8x17xf32>
    %21 = tpu.concatenate %5, %10, %15, %20 in 1 : vector<8x17xf32>, vector<8x17xf32>, vector<8x17xf32>, vector<8x17xf32> -> vector<8x68xf32>
    %22 = arith.subf %0, %21 : vector<8x68xf32>
    %23 = math.exp %22 : vector<8x68xf32>
    %c0_4 = arith.constant 0 : index
    %c0_5 = arith.constant 0 : index
    %24 = vector.load %arg2[%c0_4, %c0_5] : memref<68x8xf32, #tpu.memory_space<vmem>>, vector<68x8xf32>
    %cst_6 = arith.constant dense<0.000000e+00> : vector<8x8xf32>
    %25 = tpu.matmul %23, %24, %cst_6 {dimension_numbers = #tpu.dot_dimension_numbers<[1], [0], [0], [1], [0, 0, 1, 1], [], []>, precision = #tpu.contract_precision<fp32>} : vector<8x68xf32>, vector<68x8xf32>, vector<8x8xf32> -> vector<8x8xf32>
    %26 = vector.extract_strided_slice %25 {offsets = [0, 0], sizes = [8, 4], strides = [1, 1]} : vector<8x8xf32> to vector<8x4xf32>
    %27 = vector.extract_strided_slice %25 {offsets = [0, 4], sizes = [8, 4], strides = [1, 1]} : vector<8x8xf32> to vector<8x4xf32>
    %28 = arith.divf %26, %27 : vector<8x4xf32>
    %c0_7 = arith.constant 0 : index
    %c0_8 = arith.constant 0 : index
    %29 = vector.load %arg3[%c0_7, %c0_8] : memref<8x4xf32, #tpu.memory_space<vmem>>, vector<8x4xf32>
    tpu.vector_store %arg3[%c0_7, %c0_8], %28 {strides = array<i32>} : memref<8x4xf32, #tpu.memory_space<vmem>>, vector<8x4xf32>,
    return
  }
  func.func @transform_0(%arg0: i32) -> (i32, i32) {
    %c0_i32 = arith.constant 0 : i32
    %c0_i32_0 = arith.constant 0 : i32
    return %arg0, %c0_i32 : i32, i32
  }
  func.func @transform_1(%arg0: i32) -> (i32, i32) {
    %c0_i32 = arith.constant 0 : i32
    %c0_i32_0 = arith.constant 0 : i32
    %c0_i32_1 = arith.constant 0 : i32
    return %c0_i32, %c0_i32_0 : i32, i32
  }
  func.func @transform_2(%arg0: i32) -> (i32, i32) {
    %c0_i32 = arith.constant 0 : i32
    %c0_i32_0 = arith.constant 0 : i32
    return %arg0, %c0_i32 : i32, i32
  }
}

</mosaic_0001>

<llo_original>
// kernel: tpu_custom_call.1
$region0: #{tpu_custom_call.1}
  #allocation0 [shape = 'u32[]', space=smem, size = 0x4, offset = 0x4, fixed_abs, tag = 'smem constant byte address 0x4 - core index']
  #allocation1 [shape = 'u32[144,128]{1,0:T(1,128)}', space=vmem, size = 0x12000, scoped, tag = 'internal scratch']
  %s0 = inlined_call_operand.vmem [shape: f32[8,68], index: 0, kind: input, shape index: {}]
  %s1 = inlined_call_operand.vmem [shape: f32[68,8], index: 1, kind: input, shape index: {}]
  %s2 = inlined_call_operand.vmem [shape: f32[8,4], index: 2, kind: output, shape index: {}]
  %s3 = sld [smem:[#allocation0]]
  $region18: #{tpu_custom_call.1} parent=0
    _
  %s5 = ssub.s32 1, %s3
  %s6 = scalar_select 0, %s5, %s3
  // Predicated region
  $region2: #{tpu_custom_call.1} parent=0 // pred_check
    _
  $region3: #{tpu_custom_call.1} parent=0 // pred_check_branch
    %8 = sbr.rel (0) target = $region5
  $region4: #{tpu_custom_call.1} parent=0 // pred_region
    _
  $region5: #{tpu_custom_call.1} parent=0 // pred_fallthru
    _
  // Predicated region
  $region6: #{tpu_custom_call.1} parent=0 // pred_check
    _
  $region7: #{tpu_custom_call.1} parent=0 // pred_check_branch
    %10 = sbr.rel (0) target = $region9
  $region8: #{tpu_custom_call.1} parent=0 // pred_region
    _
  $region9: #{tpu_custom_call.1} parent=0 // pred_fallthru
    _
  %v11 = vld [vmem:[%s0] sm:$0xff]
  %vm12 = vcmask 138240
  %v13 = vsel %vm12, %v11, -inf
  %14 = vmax.xlane.f32.xlu0 %v13
  %v15 = vpop.xlane.xlu0 %14
  %vm16 = vcmask 277640
  %v17 = vsel %vm16, %v11, -inf
  %18 = vmax.xlane.f32.xlu0 %v17
  %v19 = vpop.xlane.xlu0 %18
  %vm20 = vcmask 417040
  %v21 = vsel %vm20, %v11, -inf
  %22 = vmax.xlane.f32.xlu0 %v21
  %v23 = vpop.xlane.xlu0 %22
  %vm24 = vcmask 556440
  %v25 = vsel %vm24, %v11, -inf
  %26 = vmax.xlane.f32.xlu0 %v25
  %v27 = vpop.xlane.xlu0 %26
  %v28 = vsel %vm12, %v15, %v19
  %vm29 = vcmask 277504
  %v30 = vsel %vm29, %v28, %v23
  %vm31 = vcmask 416768
  %v32 = vsel %vm31, %v30, %v27
  %v33 = vsub.f32 %v11, %v32
  %v34 = vmul.f32 %v33, 1.442695
  %v35 = vpow.pop %v34
  %v36 = vld [vmem:[%s1] sm:$0xff]
  %v37 = vld [vmem:[%s1 + $0x8] sm:$0xff]
  %v38 = vld [vmem:[%s1 + $0x10] sm:$0xff]
  %v39 = vld [vmem:[%s1 + $0x18] sm:$0xff]
  %v40 = vld [vmem:[%s1 + $0x20] sm:$0xff]
  %v41 = vld [vmem:[%s1 + $0x28] sm:$0xff]
  %v42 = vld [vmem:[%s1 + $0x30] sm:$0xff]
  %v43 = vld [vmem:[%s1 + $0x38] sm:$0xff]
  %v44 = vld [vmem:[%s1 + $0x40] sm:$0xf]
  %vm45 = vcmask 556032
  %v47 = vsel %vm45, %v35, 0
  %vm49 = vcmask 1043456
  %v51 = vsel %vm49, %v44, 0
  %53 = vmatprep.subr.mxu0 0.0
  %v54 = vand.u32 %v36, 4294901760
  %55 = vmatpush1.msra.mxu0 %v54
  %56 = vmatprep.subr.mxu0 0.0
  %v57 = vand.u32 %v37, 4294901760
  %58 = vmatpush1.msra.mxu0 %v57
  %59 = vmatprep.subr.mxu0 0.0
  %v60 = vand.u32 %v38, 4294901760
  %61 = vmatpush1.msra.mxu0 %v60
  %62 = vmatprep.subr.mxu0 0.0
  %v63 = vand.u32 %v39, 4294901760
  %64 = vmatpush1.msra.mxu0 %v63
  %65 = vmatprep.subr.mxu0 0.0
  %v66 = vand.u32 %v40, 4294901760
  %67 = vmatpush1.msra.mxu0 %v66
  %68 = vmatprep.subr.mxu0 0.0
  %v69 = vand.u32 %v41, 4294901760
  %70 = vmatpush1.msra.mxu0 %v69
  %71 = vmatprep.subr.mxu0 0.0
  %v72 = vand.u32 %v42, 4294901760
  %73 = vmatpush1.msra.mxu0 %v72
  %74 = vmatprep.subr.mxu0 0.0
  %v75 = vand.u32 %v43, 4294901760
  %76 = vmatpush1.msra.mxu0 %v75
  %77 = vmatprep.subr.mxu0 0.0
  %v78 = vand.u32 %v51, 4294901760
  %79 = vmatpush1.msra.mxu0 %v78
  %80 = vmatprep.subr.mxu0 0.0
  %81 = vmatpush1.msra.mxu0 0.0
  %82 = vmatprep.subr.mxu0 0.0
  %83 = vmatpush1.msra.mxu0 0.0
  %84 = vmatprep.subr.mxu0 0.0
  %85 = vmatpush1.msra.mxu0 0.0
  %86 = vmatprep.subr.mxu0 0.0
  %87 = vmatpush1.msra.mxu0 0.0
  %88 = vmatprep.subr.mxu0 0.0
  %89 = vmatpush1.msra.mxu0 0.0
  %90 = vmatprep.subr.mxu0 0.0
  %91 = vmatpush1.msra.mxu0 0.0
  %92 = vmatprep.subr.mxu0 0.0
  %93 = vmatpush1.msra.mxu0 0.0
  %94 = vmatprep.subr.mxu0 0.0
  %95 = vmatpush1.msra.mxu0 0.0
  %96 = vmatprep.subr.mxu0 0.0
  %97 = vmatpush1.msra.mxu0 0.0
  %98 = vmatprep.subr.mxu0 0.0
  %99 = vmatpush1.msra.mxu0 0.0
  %100 = vmatprep.subr.mxu0 0.0
  %101 = vmatpush1.msra.mxu0 0.0
  %102 = vmatprep.subr.mxu0 0.0
  %103 = vmatpush1.msra.mxu0 0.0
  %104 = vmatprep.subr.mxu0 0.0
  %105 = vmatpush1.msra.mxu0 0.0
  %106 = vmatprep.subr.mxu0 0.0
  %107 = vmatpush1.msra.mxu0 0.0
  %108 = vmatprep.subr.mxu0 0.0
  %109 = vmatpush1.msra.mxu0 0.0
  %110 = vmatprep.subr.mxu0 0.0
  %111 = vmatpush1.msra.mxu0 0.0
  %112 = vmatprep.subr.mxu0 0.0
  %113 = vmatpush1.msra.mxu0 0.0
  %114 = vmatprep.subr.mxu0 0.0
  %115 = vmatpush1.msra.mxu0 0.0
  %116 = vmatprep.subr.mxu0 0.0
  %117 = vmatpush1.msra.mxu0 0.0
  %118 = vmatprep.subr.mxu0 0.0
  %119 = vmatpush1.msra.mxu0 0.0
  %120 = vmatprep.subr.mxu0 0.0
  %121 = vmatpush1.msra.mxu0 0.0
  %122 = vmatprep.subr.mxu0 0.0
  %123 = vmatpush1.msra.mxu0 0.0
  %124 = vmatprep.subr.mxu0 0.0
  %125 = vmatpush1.msra.mxu0 0.0
  %126 = vmatprep.mubr.f32.mxu0 0.0
  %v127 = vand.u32 %v47, 4294901760
  %v128 = vsub.f32 %v47, %v127
  %v129 = vand.u32 %v128, 4294901760
  %v130 = vsub.f32 %v128, %v129
  %v131 = vand.u32 %v130, 4294901760
  %132 = vmatmul.mubr.f32.gmra.mrb[0].mxu0 %v131
  %v133 = vpop.f32.mrb[0].mxu0
  %v134 = vadd.f32 0.0, %v133
  %v135 = vpop.f32.mrb[0].mxu0
  %136 = vdwg.mxu0
  %137 = vmatprep.subr.mxu0 0.0
  %v138 = vand.u32 %v36, 4294901760
  %v139 = vsub.f32 %v36, %v138
  %v140 = vand.u32 %v139, 4294901760
  %v141 = vsub.f32 %v139, %v140
  %v142 = vand.u32 %v141, 4294901760
  %143 = vmatpush1.msra.mxu0 %v142
  %144 = vmatprep.subr.mxu0 0.0
  %v145 = vand.u32 %v37, 4294901760
  %v146 = vsub.f32 %v37, %v145
  %v147 = vand.u32 %v146, 4294901760
  %v148 = vsub.f32 %v146, %v147
  %v149 = vand.u32 %v148, 4294901760
  %150 = vmatpush1.msra.mxu0 %v149
  %151 = vmatprep.subr.mxu0 0.0
  %v152 = vand.u32 %v38, 4294901760
  %v153 = vsub.f32 %v38, %v152
  %v154 = vand.u32 %v153, 4294901760
  %v155 = vsub.f32 %v153, %v154
  %v156 = vand.u32 %v155, 4294901760
  %157 = vmatpush1.msra.mxu0 %v156
  %158 = vmatprep.subr.mxu0 0.0
  %v159 = vand.u32 %v39, 4294901760
  %v160 = vsub.f32 %v39, %v159
  %v161 = vand.u32 %v160, 4294901760
  %v162 = vsub.f32 %v160, %v161
  %v163 = vand.u32 %v162, 4294901760
  %164 = vmatpush1.msra.mxu0 %v163
  %165 = vmatprep.subr.mxu0 0.0
  %v166 = vand.u32 %v40, 4294901760
  %v167 = vsub.f32 %v40, %v166
  %v168 = vand.u32 %v167, 4294901760
  %v169 = vsub.f32 %v167, %v168
  %v170 = vand.u32 %v169, 4294901760
  %171 = vmatpush1.msra.mxu0 %v170
  %172 = vmatprep.subr.mxu0 0.0
  %v173 = vand.u32 %v41, 4294901760
  %v174 = vsub.f32 %v41, %v173
  %v175 = vand.u32 %v174, 4294901760
  %v176 = vsub.f32 %v174, %v175
  %v177 = vand.u32 %v176, 4294901760
  %178 = vmatpush1.msra.mxu0 %v177
  %179 = vmatprep.subr.mxu0 0.0
  %v180 = vand.u32 %v42, 4294901760
  %v181 = vsub.f32 %v42, %v180
  %v182 = vand.u32 %v181, 4294901760
  %v183 = vsub.f32 %v181, %v182
  %v184 = vand.u32 %v183, 4294901760
  %185 = vmatpush1.msra.mxu0 %v184
  %186 = vmatprep.subr.mxu0 0.0
  %v187 = vand.u32 %v43, 4294901760
  %v188 = vsub.f32 %v43, %v187
  %v189 = vand.u32 %v188, 4294901760
  %v190 = vsub.f32 %v188, %v189
  %v191 = vand.u32 %v190, 4294901760
  %192 = vmatpush1.msra.mxu0 %v191
  %193 = vmatprep.subr.mxu0 0.0
  %v194 = vand.u32 %v51, 4294901760
  %v195 = vsub.f32 %v51, %v194
  %v196 = vand.u32 %v195, 4294901760
  %v197 = vsub.f32 %v195, %v196
  %v198 = vand.u32 %v197, 4294901760
  %199 = vmatpush1.msra.mxu0 %v198
  %200 = vmatprep.subr.mxu0 0.0
  %201 = vmatpush1.msra.mxu0 0.0
  %202 = vmatprep.subr.mxu0 0.0
  %203 = vmatpush1.msra.mxu0 0.0
  %204 = vmatprep.subr.mxu0 0.0
  %205 = vmatpush1.msra.mxu0 0.0
  %206 = vmatprep.subr.mxu0 0.0
  %207 = vmatpush1.msra.mxu0 0.0
  %208 = vmatprep.subr.mxu0 0.0
  %209 = vmatpush1.msra.mxu0 0.0
  %210 = vmatprep.subr.mxu0 0.0
  %211 = vmatpush1.msra.mxu0 0.0
  %212 = vmatprep.subr.mxu0 0.0
  %213 = vmatpush1.msra.mxu0 0.0
  %214 = vmatprep.subr.mxu0 0.0
  %215 = vmatpush1.msra.mxu0 0.0
  %216 = vmatprep.subr.mxu0 0.0
  %217 = vmatpush1.msra.mxu0 0.0
  %218 = vmatprep.subr.mxu0 0.0
  %219 = vmatpush1.msra.mxu0 0.0
  %220 = vmatprep.subr.mxu0 0.0
  %221 = vmatpush1.msra.mxu0 0.0
  %222 = vmatprep.subr.mxu0 0.0
  %223 = vmatpush1.msra.mxu0 0.0
  %224 = vmatprep.subr.mxu0 0.0
  %225 = vmatpush1.msra.mxu0 0.0
  %226 = vmatprep.subr.mxu0 0.0
  %227 = vmatpush1.msra.mxu0 0.0
  %228 = vmatprep.subr.mxu0 0.0
  %229 = vmatpush1.msra.mxu0 0.0
  %230 = vmatprep.subr.mxu0 0.0
  %231 = vmatpush1.msra.mxu0 0.0
  %232 = vmatprep.subr.mxu0 0.0
  %233 = vmatpush1.msra.mxu0 0.0
  %234 = vmatprep.subr.mxu0 0.0
  %235 = vmatpush1.msra.mxu0 0.0
  %236 = vmatprep.subr.mxu0 0.0
  %237 = vmatpush1.msra.mxu0 0.0
  %238 = vmatprep.subr.mxu0 0.0
  %239 = vmatpush1.msra.mxu0 0.0
  %240 = vmatprep.subr.mxu0 0.0
  %241 = vmatpush1.msra.mxu0 0.0
  %242 = vmatprep.subr.mxu0 0.0
  %243 = vmatpush1.msra.mxu0 0.0
  %244 = vmatprep.subr.mxu0 0.0
  %245 = vmatpush1.msra.mxu0 0.0
  %246 = vmatprep.mubr.f32.mxu0 0.0
  %v247 = vand.u32 %v47, 4294901760
  %248 = vmatmul.mubr.f32.gmra.mrb[0].mxu0 %v247
  %v249 = vpop.f32.mrb[0].mxu0
  %v250 = vadd.f32 %v134, %v249
  %v251 = vpop.f32.mrb[0].mxu0
  %252 = vdwg.mxu0
  %253 = vmatprep.subr.mxu0 0.0
  %v254 = vand.u32 %v36, 4294901760
  %v255 = vsub.f32 %v36, %v254
  %256 = vmatpush1.msra.mxu0 %v255
  %257 = vmatprep.subr.mxu0 0.0
  %v258 = vand.u32 %v37, 4294901760
  %v259 = vsub.f32 %v37, %v258
  %260 = vmatpush1.msra.mxu0 %v259
  %261 = vmatprep.subr.mxu0 0.0
  %v262 = vand.u32 %v38, 4294901760
  %v263 = vsub.f32 %v38, %v262
  %264 = vmatpush1.msra.mxu0 %v263
  %265 = vmatprep.subr.mxu0 0.0
  %v266 = vand.u32 %v39, 4294901760
  %v267 = vsub.f32 %v39, %v266
  %268 = vmatpush1.msra.mxu0 %v267
  %269 = vmatprep.subr.mxu0 0.0
  %v270 = vand.u32 %v40, 4294901760
  %v271 = vsub.f32 %v40, %v270
  %272 = vmatpush1.msra.mxu0 %v271
  %273 = vmatprep.subr.mxu0 0.0
  %v274 = vand.u32 %v41, 4294901760
  %v275 = vsub.f32 %v41, %v274
  %276 = vmatpush1.msra.mxu0 %v275
  %277 = vmatprep.subr.mxu0 0.0
  %v278 = vand.u32 %v42, 4294901760
  %v279 = vsub.f32 %v42, %v278
  %280 = vmatpush1.msra.mxu0 %v279
  %281 = vmatprep.subr.mxu0 0.0
  %v282 = vand.u32 %v43, 4294901760
  %v283 = vsub.f32 %v43, %v282
  %284 = vmatpush1.msra.mxu0 %v283
  %285 = vmatprep.subr.mxu0 0.0
  %v286 = vand.u32 %v51, 4294901760
  %v287 = vsub.f32 %v51, %v286
  %288 = vmatpush1.msra.mxu0 %v287
  %289 = vmatprep.subr.mxu0 0.0
  %290 = vmatpush1.msra.mxu0 0.0
  %291 = vmatprep.subr.mxu0 0.0
  %292 = vmatpush1.msra.mxu0 0.0
  %293 = vmatprep.subr.mxu0 0.0
  %294 = vmatpush1.msra.mxu0 0.0
  %295 = vmatprep.subr.mxu0 0.0
  %296 = vmatpush1.msra.mxu0 0.0
  %297 = vmatprep.subr.mxu0 0.0
  %298 = vmatpush1.msra.mxu0 0.0
  %299 = vmatprep.subr.mxu0 0.0
  %300 = vmatpush1.msra.mxu0 0.0
  %301 = vmatprep.subr.mxu0 0.0
  %302 = vmatpush1.msra.mxu0 0.0
  %303 = vmatprep.subr.mxu0 0.0
  %304 = vmatpush1.msra.mxu0 0.0
  %305 = vmatprep.subr.mxu0 0.0
  %306 = vmatpush1.msra.mxu0 0.0
  %307 = vmatprep.subr.mxu0 0.0
  %308 = vmatpush1.msra.mxu0 0.0
  %309 = vmatprep.subr.mxu0 0.0
  %310 = vmatpush1.msra.mxu0 0.0
  %311 = vmatprep.subr.mxu0 0.0
  %312 = vmatpush1.msra.mxu0 0.0
  %313 = vmatprep.subr.mxu0 0.0
  %314 = vmatpush1.msra.mxu0 0.0
  %315 = vmatprep.subr.mxu0 0.0
  %316 = vmatpush1.msra.mxu0 0.0
  %317 = vmatprep.subr.mxu0 0.0
  %318 = vmatpush1.msra.mxu0 0.0
  %319 = vmatprep.subr.mxu0 0.0
  %320 = vmatpush1.msra.mxu0 0.0
  %321 = vmatprep.subr.mxu0 0.0
  %322 = vmatpush1.msra.mxu0 0.0
  %323 = vmatprep.subr.mxu0 0.0
  %324 = vmatpush1.msra.mxu0 0.0
  %325 = vmatprep.subr.mxu0 0.0
  %326 = vmatpush1.msra.mxu0 0.0
  %327 = vmatprep.subr.mxu0 0.0
  %328 = vmatpush1.msra.mxu0 0.0
  %329 = vmatprep.subr.mxu0 0.0
  %330 = vmatpush1.msra.mxu0 0.0
  %331 = vmatprep.subr.mxu0 0.0
  %332 = vmatpush1.msra.mxu0 0.0
  %333 = vmatprep.subr.mxu0 0.0
  %334 = vmatpush1.msra.mxu0 0.0
  %335 = vmatprep.mubr.f32.mxu0 0.0
  %v336 = vand.u32 %v47, 4294901760
  %v337 = vsub.f32 %v47, %v336
  %338 = vmatmul.mubr.f32.gmra.mrb[0].mxu0 %v337
  %v339 = vpop.f32.mrb[0].mxu0
  %v340 = vadd.f32 %v250, %v339
  %v341 = vpop.f32.mrb[0].mxu0
  %342 = vdwg.mxu0
  %343 = vmatprep.subr.mxu0 0.0
  %v344 = vand.u32 %v36, 4294901760
  %345 = vmatpush1.msra.mxu0 %v344
  %346 = vmatprep.subr.mxu0 0.0
  %v347 = vand.u32 %v37, 4294901760
  %348 = vmatpush1.msra.mxu0 %v347
  %349 = vmatprep.subr.mxu0 0.0
  %v350 = vand.u32 %v38, 4294901760
  %351 = vmatpush1.msra.mxu0 %v350
  %352 = vmatprep.subr.mxu0 0.0
  %v353 = vand.u32 %v39, 4294901760
  %354 = vmatpush1.msra.mxu0 %v353
  %355 = vmatprep.subr.mxu0 0.0
  %v356 = vand.u32 %v40, 4294901760
  %357 = vmatpush1.msra.mxu0 %v356
  %358 = vmatprep.subr.mxu0 0.0
  %v359 = vand.u32 %v41, 4294901760
  %360 = vmatpush1.msra.mxu0 %v359
  %361 = vmatprep.subr.mxu0 0.0
  %v362 = vand.u32 %v42, 4294901760
  %363 = vmatpush1.msra.mxu0 %v362
  %364 = vmatprep.subr.mxu0 0.0
  %v365 = vand.u32 %v43, 4294901760
  %366 = vmatpush1.msra.mxu0 %v365
  %367 = vmatprep.subr.mxu0 0.0
  %v368 = vand.u32 %v51, 4294901760
  %369 = vmatpush1.msra.mxu0 %v368
  %370 = vmatprep.subr.mxu0 0.0
  %371 = vmatpush1.msra.mxu0 0.0
  %372 = vmatprep.subr.mxu0 0.0
  %373 = vmatpush1.msra.mxu0 0.0
  %374 = vmatprep.subr.mxu0 0.0
  %375 = vmatpush1.msra.mxu0 0.0
  %376 = vmatprep.subr.mxu0 0.0
  %377 = vmatpush1.msra.mxu0 0.0
  %378 = vmatprep.subr.mxu0 0.0
  %379 = vmatpush1.msra.mxu0 0.0
  %380 = vmatprep.subr.mxu0 0.0
  %381 = vmatpush1.msra.mxu0 0.0
  %382 = vmatprep.subr.mxu0 0.0
  %383 = vmatpush1.msra.mxu0 0.0
  %384 = vmatprep.subr.mxu0 0.0
  %385 = vmatpush1.msra.mxu0 0.0
  %386 = vmatprep.subr.mxu0 0.0
  %387 = vmatpush1.msra.mxu0 0.0
  %388 = vmatprep.subr.mxu0 0.0
  %389 = vmatpush1.msra.mxu0 0.0
  %390 = vmatprep.subr.mxu0 0.0
  %391 = vmatpush1.msra.mxu0 0.0
  %392 = vmatprep.subr.mxu0 0.0
  %393 = vmatpush1.msra.mxu0 0.0
  %394 = vmatprep.subr.mxu0 0.0
  %395 = vmatpush1.msra.mxu0 0.0
  %396 = vmatprep.subr.mxu0 0.0
  %397 = vmatpush1.msra.mxu0 0.0
  %398 = vmatprep.subr.mxu0 0.0
  %399 = vmatpush1.msra.mxu0 0.0
  %400 = vmatprep.subr.mxu0 0.0
  %401 = vmatpush1.msra.mxu0 0.0
  %402 = vmatprep.subr.mxu0 0.0
  %403 = vmatpush1.msra.mxu0 0.0
  %404 = vmatprep.subr.mxu0 0.0
  %405 = vmatpush1.msra.mxu0 0.0
  %406 = vmatprep.subr.mxu0 0.0
  %407 = vmatpush1.msra.mxu0 0.0
  %408 = vmatprep.subr.mxu0 0.0
  %409 = vmatpush1.msra.mxu0 0.0
  %410 = vmatprep.subr.mxu0 0.0
  %411 = vmatpush1.msra.mxu0 0.0
  %412 = vmatprep.subr.mxu0 0.0
  %413 = vmatpush1.msra.mxu0 0.0
  %414 = vmatprep.subr.mxu0 0.0
  %415 = vmatpush1.msra.mxu0 0.0
  %416 = vmatprep.mubr.f32.mxu0 0.0
  %v417 = vand.u32 %v47, 4294901760
  %v418 = vsub.f32 %v47, %v417
  %v419 = vand.u32 %v418, 4294901760
  %420 = vmatmul.mubr.f32.gmra.mrb[0].mxu0 %v419
  %v421 = vpop.f32.mrb[0].mxu0
  %v422 = vadd.f32 %v340, %v421
  %v423 = vpop.f32.mrb[0].mxu0
  %424 = vdwg.mxu0
  %425 = vmatprep.subr.mxu0 0.0
  %v426 = vand.u32 %v36, 4294901760
  %v427 = vsub.f32 %v36, %v426
  %v428 = vand.u32 %v427, 4294901760
  %429 = vmatpush1.msra.mxu0 %v428
  %430 = vmatprep.subr.mxu0 0.0
  %v431 = vand.u32 %v37, 4294901760
  %v432 = vsub.f32 %v37, %v431
  %v433 = vand.u32 %v432, 4294901760
  %434 = vmatpush1.msra.mxu0 %v433
  %435 = vmatprep.subr.mxu0 0.0
  %v436 = vand.u32 %v38, 4294901760
  %v437 = vsub.f32 %v38, %v436
  %v438 = vand.u32 %v437, 4294901760
  %439 = vmatpush1.msra.mxu0 %v438
  %440 = vmatprep.subr.mxu0 0.0
  %v441 = vand.u32 %v39, 4294901760
  %v442 = vsub.f32 %v39, %v441
  %v443 = vand.u32 %v442, 4294901760
  %444 = vmatpush1.msra.mxu0 %v443
  %445 = vmatprep.subr.mxu0 0.0
  %v446 = vand.u32 %v40, 4294901760
  %v447 = vsub.f32 %v40, %v446
  %v448 = vand.u32 %v447, 4294901760
  %449 = vmatpush1.msra.mxu0 %v448
  %450 = vmatprep.subr.mxu0 0.0
  %v451 = vand.u32 %v41, 4294901760
  %v452 = vsub.f32 %v41, %v451
  %v453 = vand.u32 %v452, 4294901760
  %454 = vmatpush1.msra.mxu0 %v453
  %455 = vmatprep.subr.mxu0 0.0
  %v456 = vand.u32 %v42, 4294901760
  %v457 = vsub.f32 %v42, %v456
  %v458 = vand.u32 %v457, 4294901760
  %459 = vmatpush1.msra.mxu0 %v458
  %460 = vmatprep.subr.mxu0 0.0
  %v461 = vand.u32 %v43, 4294901760
  %v462 = vsub.f32 %v43, %v461
  %v463 = vand.u32 %v462, 4294901760
  %464 = vmatpush1.msra.mxu0 %v463
  %465 = vmatprep.subr.mxu0 0.0
  %v466 = vand.u32 %v51, 4294901760
  %v467 = vsub.f32 %v51, %v466
  %v468 = vand.u32 %v467, 4294901760
  %469 = vmatpush1.msra.mxu0 %v468
  %470 = vmatprep.subr.mxu0 0.0
  %471 = vmatpush1.msra.mxu0 0.0
  %472 = vmatprep.subr.mxu0 0.0
  %473 = vmatpush1.msra.mxu0 0.0
  %474 = vmatprep.subr.mxu0 0.0
  %475 = vmatpush1.msra.mxu0 0.0
  %476 = vmatprep.subr.mxu0 0.0
  %477 = vmatpush1.msra.mxu0 0.0
  %478 = vmatprep.subr.mxu0 0.0
  %479 = vmatpush1.msra.mxu0 0.0
  %480 = vmatprep.subr.mxu0 0.0
  %481 = vmatpush1.msra.mxu0 0.0
  %482 = vmatprep.subr.mxu0 0.0
  %483 = vmatpush1.msra.mxu0 0.0
  %484 = vmatprep.subr.mxu0 0.0
  %485 = vmatpush1.msra.mxu0 0.0
  %486 = vmatprep.subr.mxu0 0.0
  %487 = vmatpush1.msra.mxu0 0.0
  %488 = vmatprep.subr.mxu0 0.0
  %489 = vmatpush1.msra.mxu0 0.0
  %490 = vmatprep.subr.mxu0 0.0
  %491 = vmatpush1.msra.mxu0 0.0
  %492 = vmatprep.subr.mxu0 0.0
  %493 = vmatpush1.msra.mxu0 0.0
  %494 = vmatprep.subr.mxu0 0.0
  %495 = vmatpush1.msra.mxu0 0.0
  %496 = vmatprep.subr.mxu0 0.0
  %497 = vmatpush1.msra.mxu0 0.0
  %498 = vmatprep.subr.mxu0 0.0
  %499 = vmatpush1.msra.mxu0 0.0
  %500 = vmatprep.subr.mxu0 0.0
  %501 = vmatpush1.msra.mxu0 0.0
  %502 = vmatprep.subr.mxu0 0.0
  %503 = vmatpush1.msra.mxu0 0.0
  %504 = vmatprep.subr.mxu0 0.0
  %505 = vmatpush1.msra.mxu0 0.0
  %506 = vmatprep.subr.mxu0 0.0
  %507 = vmatpush1.msra.mxu0 0.0
  %508 = vmatprep.subr.mxu0 0.0
  %509 = vmatpush1.msra.mxu0 0.0
  %510 = vmatprep.subr.mxu0 0.0
  %511 = vmatpush1.msra.mxu0 0.0
  %512 = vmatprep.subr.mxu0 0.0
  %513 = vmatpush1.msra.mxu0 0.0
  %514 = vmatprep.subr.mxu0 0.0
  %515 = vmatpush1.msra.mxu0 0.0
  %516 = vmatprep.mubr.f32.mxu0 0.0
  %v517 = vand.u32 %v47, 4294901760
  %518 = vmatmul.mubr.f32.gmra.mrb[0].mxu0 %v517
  %v519 = vpop.f32.mrb[0].mxu0
  %v520 = vadd.f32 %v422, %v519
  %v521 = vpop.f32.mrb[0].mxu0
  %522 = vdwg.mxu0
  %523 = vmatprep.subr.mxu0 0.0
  %v524 = vand.u32 %v36, 4294901760
  %525 = vmatpush1.msra.mxu0 %v524
  %526 = vmatprep.subr.mxu0 0.0
  %v527 = vand.u32 %v37, 4294901760
  %528 = vmatpush1.msra.mxu0 %v527
  %529 = vmatprep.subr.mxu0 0.0
  %v530 = vand.u32 %v38, 4294901760
  %531 = vmatpush1.msra.mxu0 %v530
  %532 = vmatprep.subr.mxu0 0.0
  %v533 = vand.u32 %v39, 4294901760
  %534 = vmatpush1.msra.mxu0 %v533
  %535 = vmatprep.subr.mxu0 0.0
  %v536 = vand.u32 %v40, 4294901760
  %537 = vmatpush1.msra.mxu0 %v536
  %538 = vmatprep.subr.mxu0 0.0
  %v539 = vand.u32 %v41, 4294901760
  %540 = vmatpush1.msra.mxu0 %v539
  %541 = vmatprep.subr.mxu0 0.0
  %v542 = vand.u32 %v42, 4294901760
  %543 = vmatpush1.msra.mxu0 %v542
  %544 = vmatprep.subr.mxu0 0.0
  %v545 = vand.u32 %v43, 4294901760
  %546 = vmatpush1.msra.mxu0 %v545
  %547 = vmatprep.subr.mxu0 0.0
  %v548 = vand.u32 %v51, 4294901760
  %549 = vmatpush1.msra.mxu0 %v548
  %550 = vmatprep.subr.mxu0 0.0
  %551 = vmatpush1.msra.mxu0 0.0
  %552 = vmatprep.subr.mxu0 0.0
  %553 = vmatpush1.msra.mxu0 0.0
  %554 = vmatprep.subr.mxu0 0.0
  %555 = vmatpush1.msra.mxu0 0.0
  %556 = vmatprep.subr.mxu0 0.0
  %557 = vmatpush1.msra.mxu0 0.0
  %558 = vmatprep.subr.mxu0 0.0
  %559 = vmatpush1.msra.mxu0 0.0
  %560 = vmatprep.subr.mxu0 0.0
  %561 = vmatpush1.msra.mxu0 0.0
  %562 = vmatprep.subr.mxu0 0.0
  %563 = vmatpush1.msra.mxu0 0.0
  %564 = vmatprep.subr.mxu0 0.0
  %565 = vmatpush1.msra.mxu0 0.0
  %566 = vmatprep.subr.mxu0 0.0
  %567 = vmatpush1.msra.mxu0 0.0
  %568 = vmatprep.subr.mxu0 0.0
  %569 = vmatpush1.msra.mxu0 0.0
  %570 = vmatprep.subr.mxu0 0.0
  %571 = vmatpush1.msra.mxu0 0.0
  %572 = vmatprep.subr.mxu0 0.0
  %573 = vmatpush1.msra.mxu0 0.0
  %574 = vmatprep.subr.mxu0 0.0
  %575 = vmatpush1.msra.mxu0 0.0
  %576 = vmatprep.subr.mxu0 0.0
  %577 = vmatpush1.msra.mxu0 0.0
  %578 = vmatprep.subr.mxu0 0.0
  %579 = vmatpush1.msra.mxu0 0.0
  %580 = vmatprep.subr.mxu0 0.0
  %581 = vmatpush1.msra.mxu0 0.0
  %582 = vmatprep.subr.mxu0 0.0
  %583 = vmatpush1.msra.mxu0 0.0
  %584 = vmatprep.subr.mxu0 0.0
  %585 = vmatpush1.msra.mxu0 0.0
  %586 = vmatprep.subr.mxu0 0.0
  %587 = vmatpush1.msra.mxu0 0.0
  %588 = vmatprep.subr.mxu0 0.0
  %589 = vmatpush1.msra.mxu0 0.0
  %590 = vmatprep.subr.mxu0 0.0
  %591 = vmatpush1.msra.mxu0 0.0
  %592 = vmatprep.subr.mxu0 0.0
  %593 = vmatpush1.msra.mxu0 0.0
  %594 = vmatprep.subr.mxu0 0.0
  %595 = vmatpush1.msra.mxu0 0.0
  %596 = vmatprep.mubr.f32.mxu0 0.0
  %v597 = vand.u32 %v47, 4294901760
  %598 = vmatmul.mubr.f32.gmra.mrb[0].mxu0 %v597
  %v599 = vpop.f32.mrb[0].mxu0
  %v600 = vadd.f32 %v520, %v599
  %v601 = vpop.f32.mrb[0].mxu0
  %602 = vdwg.mxu0
  %604 = vrot.lane.b32.xlu0 %v600, 124
  %v605 = vpop.permute.xlu0 %604
  %v607 = vrcp.pop %v605
  %v608 = vmul.f32 %v600, %v607
  %vm609 = vcmask 31744
  %610 = vst.msk [vmem:[%s2] sm:$0xff] %vm609, %v608
  // Predicated region
  $region10: #{tpu_custom_call.1} parent=0 // pred_check
    _
  $region11: #{tpu_custom_call.1} parent=0 // pred_check_branch
    %612 = sbr.rel (0) target = $region13
  $region12: #{tpu_custom_call.1} parent=0 // pred_region
    _
  $region13: #{tpu_custom_call.1} parent=0 // pred_fallthru
    _
  // Predicated region
  $region14: #{tpu_custom_call.1} parent=0 // pred_check
    _
  $region15: #{tpu_custom_call.1} parent=0 // pred_check_branch
    %614 = sbr.rel (0) target = $region17
  $region16: #{tpu_custom_call.1} parent=0 // pred_region
    _
  $region17: #{tpu_custom_call.1} parent=0 // pred_fallthru
    _

</llo_original>
